<compile_context>
chip_gen: v7x
topology: tpu7x:2x2x1
jax: 0.10.0
libtpu: 0.0.40
codegen_flags: <defaults>
</compile_context>

<pallas_src>
import functools

import jax
import jax.numpy as jnp
from jax import lax
from jax.experimental import pallas as pl
from jax.experimental.pallas import tpu as pltpu


def _transition_kernel(bn_ref, w_ref, p_ref, x_ref, o_ref, pooled_ref,
                       *, total_l, needs_mask):
    # bn : (C_in, 2)      col 0 = scale, col 1 = shift (folded training-mode BN)
    # w  : (C_out, C_in)  1x1 conv weight
    # p  : (PC, PC//2)    pool stencil (0.5 on adjacent-pair rows)
    # x  : (C_in, TILE_L)          (batch dim squeezed by BlockSpec)
    # o  : (C_out, OUT_TILE)
    # pooled_ref : VMEM scratch (C_in, OUT_TILE), f32
    c_in, tile_l = x_ref.shape
    pc, po = p_ref.shape
    n_chunks = max(tile_l // pc, 1)            # static

    p = p_ref[...]
    w = w_ref[...]
    # Hoist BN scale/shift broadcasts out of the chunk loop (JAX does not CSE
    # broadcast_in_dim).
    scale_b = jnp.broadcast_to(bn_ref[:, 0:1], (c_in, pc))
    shift_b = jnp.broadcast_to(bn_ref[:, 1:2], (c_in, pc))

    tile_start = pl.program_id(1) * tile_l
    if needs_mask:
        col_iota = lax.broadcasted_iota(jnp.int32, (c_in, pc), 1)

    def do_chunk(off_x, off_o):
        xc = x_ref[:, pl.ds(off_x, pc)]
        xr = jnp.maximum(xc * scale_b + shift_b, 0.0)            # BN + ReLU (VPU)
        if needs_mask:
            # Zero padded lanes of the (grid-padded) last tile so garbage
            # (possibly NaN/Inf) can't leak into valid pooled outputs through
            # the zero-weight stencil entries (0 * NaN = NaN).
            gcol = tile_start + off_x + col_iota
            xr = jnp.where(gcol < total_l, xr, 0.0)
        # AvgPool1d(2,2) applied BEFORE the 1x1 conv (both linear -> exact).
        pooled_ref[:, pl.ds(off_o, po)] = jnp.dot(
            xr.astype(p.dtype), p, preferred_element_type=jnp.float32)

    if n_chunks <= 4:
        for c in range(n_chunks):                                 # small static unroll
            do_chunk(c * pc, c * po)
    else:
        def body(c, carry):                                       # bounded vreg pressure
            do_chunk(pl.multiple_of(c * pc, pc), pl.multiple_of(c * po, po))
            return carry
        lax.fori_loop(0, n_chunks, body, 0, unroll=2)

    # ONE wide conv matmul over the whole pooled tile + one lane-dense store.
    y = jnp.dot(w, pooled_ref[...].astype(w.dtype),
                preferred_element_type=jnp.float32)
    o_ref[...] = y.astype(o_ref.dtype)


def _tpu_caps():
    """Per-generation VMEM capacity + 'is the MXU 256 wide' hint."""
    vmem_cap = 64 << 20          # safe default: v7x physical per-TC VMEM
    wide_mxu = False
    try:
        info = pltpu.get_tpu_info()
        vmem_cap = int(getattr(info, "vmem_capacity_bytes", vmem_cap))
        ver = str(getattr(info, "chip_version", "")).lower()
        wide_mxu = any(t in ver for t in ("v6", "v7", "6e", "7x", "trillium"))
    except Exception:
        pass
    return vmem_cap, wide_mxu


def _plan(N, c_in, c_out, L, in_isz, out_isz):
    """Choose (tile_l, pc, grid_l, needs_mask, vmem_limit)."""
    L_out = L // 2
    L_eff = 2 * L_out
    vmem_cap, wide_mxu = _tpu_caps()
    vmem_limit = int(vmem_cap * 0.85)      # scoped-VMEM limit passed to Mosaic
    budget = vmem_cap // 2                 # budget for our blocks + scratch

    if L_eff <= 512:
        # Whole L in one tile / one pooling chunk.
        return dict(tile_l=L, pc=max(L_eff, 2), grid_l=1,
                    needs_mask=False, vmem_limit=vmem_limit)

    # pc=512 -> 256 pooled output lanes fills the 256-wide MXU on v6e/v7x.
    # pc=256 -> 128 lanes is already full width on v5e and halves stencil FLOPs.
    pc = 512 if wide_mxu else 256

    resident = 2 * (c_in * 2 * 4 + c_out * c_in * 4 + pc * (pc // 2) * 4)
    # Per input column: double-buffered x + double-buffered out (half length)
    # + pooled scratch (half length, f32) + conv-result temp (half length, f32).
    per_col = 2 * c_in * in_isz + c_out * out_isz + 2 * c_in + 2 * c_out
    max_tl = (budget - resident) // max(per_col, 1)
    max_tl = max(pc, (max_tl // pc) * pc)
    tile_l = min(max_tl, ((L_eff + pc - 1) // pc) * pc)
    grid_l = pl.cdiv(L_out, tile_l // 2)

    # Keep >=2 grid steps when possible (v7x megacore sharding + pipelining).
    if N == 1 and grid_l == 1 and tile_l >= 2 * pc:
        tile_l = ((tile_l // 2 + pc - 1) // pc) * pc
        grid_l = pl.cdiv(L_out, tile_l // 2)

    needs_mask = grid_l * tile_l > L
    return dict(tile_l=tile_l, pc=pc, grid_l=grid_l,
                needs_mask=needs_mask, vmem_limit=vmem_limit)


def transition_layer(x, gamma, beta, conv_w, *, eps=1e-5, matmul_dtype=None):
    """x: (N, C_in, L) -> (N, C_out, L // 2).

    Training-mode BatchNorm1d (batch statistics, biased variance), ReLU,
    1x1 Conv1d (no bias), AvgPool1d(2, 2) — matching the PyTorch module.
    matmul_dtype=jnp.bfloat16 casts only matmul operands (f32 accumulation).
    """
    N, C_in, L = x.shape
    if conv_w.ndim == 3:                       # accept PyTorch (C_out, C_in, 1)
        conv_w = conv_w[:, :, 0]
    C_out = conv_w.shape[0]
    L_out = L // 2

    # ---- BatchNorm1d training-mode stats: single fused pass over x ---------
    # Shifted sum / sum-of-squares (shift = first sample per channel) keeps a
    # single read of x while avoiding most E[x^2]-E[x]^2 cancellation.
    x32 = x.astype(jnp.float32)
    cnt = N * L
    c0 = x32[:1, :, :1]                                     # (1, C_in, 1)
    d = x32 - c0
    s = jnp.sum(d, axis=(0, 2))
    ss = jnp.sum(d * d, axis=(0, 2))
    mean_d = s / cnt
    var = jnp.maximum(ss / cnt - mean_d * mean_d, 0.0)      # biased variance
    mean = mean_d + c0[0, :, 0]
    inv = lax.rsqrt(var + eps)
    scale = gamma.astype(jnp.float32) * inv
    shift = beta.astype(jnp.float32) - mean * scale
    bn = jnp.stack([scale, shift], axis=1)                  # (C_in, 2), resident

    mm_dtype = jnp.float32 if matmul_dtype is None else matmul_dtype
    w = conv_w.astype(mm_dtype)

    # ---- tiling plan --------------------------------------------------------
    plan = _plan(N, C_in, C_out, L, x.dtype.itemsize, x.dtype.itemsize)
    tile_l, pc, grid_l = plan["tile_l"], plan["pc"], plan["grid_l"]
    needs_mask, vmem_limit = plan["needs_mask"], plan["vmem_limit"]
    po = pc // 2
    out_tile = max(tile_l // pc, 1) * po     # = tile_l//2 (or L_out, small case)

    # Constant pooling stencil: pool[2j, j] = pool[2j+1, j] = 0.5.
    rows = jnp.arange(pc)[:, None]
    cols = jnp.arange(po)[None, :]
    pool = jnp.where(rows // 2 == cols, 0.5, 0.0).astype(mm_dtype)

    kernel = functools.partial(_transition_kernel, total_l=L, needs_mask=needs_mask)
    grid = (N, grid_l)

    out = pl.pallas_call(
        kernel,
        out_shape=jax.ShapeDtypeStruct((N, C_out, L_out), x.dtype),
        grid_spec=pltpu.PrefetchScalarGridSpec(
            num_scalar_prefetch=0,
            grid=grid,
            in_specs=[
                pl.BlockSpec((C_in, 2), lambda nb, lt: (0, 0)),       # BN scale/shift
                pl.BlockSpec((C_out, C_in), lambda nb, lt: (0, 0)),   # conv weight
                pl.BlockSpec((pc, po), lambda nb, lt: (0, 0)),        # pool stencil
                pl.BlockSpec((None, C_in, tile_l),
                             lambda nb, lt: (nb, 0, lt)),             # x tile
            ],
            out_specs=pl.BlockSpec((None, C_out, out_tile),
                                   lambda nb, lt: (nb, 0, lt)),
            scratch_shapes=[pltpu.VMEM((C_in, out_tile), jnp.float32)],
        ),
        compiler_params=pltpu.CompilerParams(
            dimension_semantics=("parallel", "parallel"),
            vmem_limit_bytes=int(vmem_limit)),
    )(bn, w, pool, x)
    return out


def _reference(x, gamma, beta, conv_w, eps=1e-5):
    """Pure-JAX reference of the PyTorch forward (training-mode BN)."""
    mean = jnp.mean(x, axis=(0, 2), keepdims=True)
    var = jnp.var(x, axis=(0, 2), keepdims=True)
    xh = (x - mean) * lax.rsqrt(var + eps) * gamma[None, :, None] + beta[None, :, None]
    xr = jnp.maximum(xh, 0.0)
    y = jnp.einsum("oc,ncl->nol", conv_w, xr, precision=jax.lax.Precision.HIGHEST)
    n, co, l = y.shape
    lo = l // 2
    return y[..., :2 * lo].reshape(n, co, lo, 2).mean(-1)


if __name__ == "__main__":
    key = jax.random.PRNGKey(0)

    # ---- Test 1: tiny single-tile / single-chunk path -----------------------
    N, C_in, C_out, L = 2, 8, 4, 16
    k1, k2, k3, k4, key = jax.random.split(key, 5)
    x = jax.random.normal(k1, (N, C_in, L), dtype=jnp.float32)
    gamma = 1.0 + 0.1 * jax.random.normal(k2, (C_in,), dtype=jnp.float32)
    beta = 0.1 * jax.random.normal(k3, (C_in,), dtype=jnp.float32)
    conv_w = 0.1 * jax.random.normal(k4, (C_out, C_in), dtype=jnp.float32)

    out = jax.block_until_ready(transition_layer(x, gamma, beta, conv_w))
    ref = _reference(x, gamma, beta, conv_w)
    assert out.shape == (N, C_out, L // 2)
    assert jnp.allclose(out, ref, atol=1e-3, rtol=1e-3), \
        float(jnp.max(jnp.abs(out - ref)))

    # ---- Test 2: multi-chunk tile, odd L, grid-padding mask, fori_loop path --
    N, C_in, C_out, L = 3, 16, 8, 2701
    k1, k2, k3, k4, key = jax.random.split(key, 5)
    x = jax.random.normal(k1, (N, C_in, L), dtype=jnp.float32)
    gamma = 1.0 + 0.1 * jax.random.normal(k2, (C_in,), dtype=jnp.float32)
    beta = 0.1 * jax.random.normal(k3, (C_in,), dtype=jnp.float32)
    conv_w = 0.1 * jax.random.normal(k4, (C_out, C_in), dtype=jnp.float32)

    out = jax.block_until_ready(transition_layer(x, gamma, beta, conv_w))
    ref = _reference(x, gamma, beta, conv_w)
    assert out.shape == (N, C_out, L // 2)
    assert jnp.allclose(out, ref, atol=1e-3, rtol=1e-3), \
        float(jnp.max(jnp.abs(out - ref)))

    print("KERNEL_OK")
</pallas_src>

<mosaic_0001>
module attributes {stable_mosaic.version = 11 : i64} {
  func.func @_transition_kernel(%arg0: i32, %arg1: i32, %arg2: memref<8x2xf32, #tpu.memory_space<vmem>>, %arg3: memref<4x8xf32, #tpu.memory_space<vmem>>, %arg4: memref<16x8xf32, #tpu.memory_space<vmem>>, %arg5: memref<1x8x16xf32, #tpu.memory_space<vmem>>, %arg6: memref<1x4x8xf32, #tpu.memory_space<vmem>>, %arg7: memref<8x8xf32, #tpu.memory_space<vmem>>) attributes {dimension_semantics = [#tpu.dimension_semantics<parallel>, #tpu.dimension_semantics<parallel>], iteration_bounds = array<i64: 2, 1>, scalar_prefetch = 0 : i64, scratch_operands = 1 : i64, tpu.core_type = #tpu.core_type<tc>, window_params = [{pipeline_mode = #tpu.pipeline_mode<synchronous>, transform_indices = @transform_0, window_bounds = array<i64: 8, 2>}, {pipeline_mode = #tpu.pipeline_mode<synchronous>, transform_indices = @transform_1, window_bounds = array<i64: 4, 8>}, {pipeline_mode = #tpu.pipeline_mode<synchronous>, transform_indices = @transform_2, window_bounds = array<i64: 16, 8>}, {transform_indices = @transform_3, window_bounds = array<i64: 1, 8, 16>}, {transform_indices = @transform_4, window_bounds = array<i64: 1, 4, 8>}]} {
    %c0 = arith.constant 0 : index
    %c0_0 = arith.constant 0 : index
    %0 = vector.load %arg4[%c0, %c0_0] : memref<16x8xf32, #tpu.memory_space<vmem>>, vector<16x8xf32>
    %c0_1 = arith.constant 0 : index
    %c0_2 = arith.constant 0 : index
    %1 = vector.load %arg3[%c0_1, %c0_2] : memref<4x8xf32, #tpu.memory_space<vmem>>, vector<4x8xf32>
    %c0_3 = arith.constant 0 : index
    %c0_4 = arith.constant 0 : index
    %2 = vector.load %arg2[%c0_3, %c0_4] : memref<8x2xf32, #tpu.memory_space<vmem>>, vector<8x1xf32>
    %3 = vector.shape_cast %2 : vector<8x1xf32> to vector<8x1xf32>
    %4 = vector.broadcast %3 : vector<8x1xf32> to vector<8x16xf32>
    %c0_5 = arith.constant 0 : index
    %c1 = arith.constant 1 : index
    %5 = vector.load %arg2[%c0_5, %c1] : memref<8x2xf32, #tpu.memory_space<vmem>>, vector<8x1xf32>
    %6 = vector.shape_cast %5 : vector<8x1xf32> to vector<8x1xf32>
    %7 = vector.broadcast %6 : vector<8x1xf32> to vector<8x16xf32>
    %c0_6 = arith.constant 0 : index
    %c0_7 = arith.constant 0 : index
    %c0_8 = arith.constant 0 : index
    %8 = vector.load %arg5[%c0_6, %c0_7, %c0_8] : memref<1x8x16xf32, #tpu.memory_space<vmem>>, vector<1x8x16xf32>
    %9 = vector.shape_cast %8 : vector<1x8x16xf32> to vector<8x16xf32>
    %10 = arith.mulf %9, %4 : vector<8x16xf32>
    %11 = arith.addf %10, %7 : vector<8x16xf32>
    %cst = arith.constant 0.000000e+00 : f32
    %12 = vector.broadcast %cst : f32 to vector<8x16xf32>
    %13 = arith.maximumf %11, %12 : vector<8x16xf32>
    %cst_9 = arith.constant dense<0.000000e+00> : vector<8x8xf32>
    %14 = tpu.matmul %13, %0, %cst_9 {dimension_numbers = #tpu.dot_dimension_numbers<[1], [0], [0], [1], [0, 0, 1, 1], [], []>} : vector<8x16xf32>, vector<16x8xf32>, vector<8x8xf32> -> vector<8x8xf32>
    %c0_10 = arith.constant 0 : index
    %c0_11 = arith.constant 0 : index
    %15 = vector.load %arg7[%c0_10, %c0_11] : memref<8x8xf32, #tpu.memory_space<vmem>>, vector<8x8xf32>
    tpu.vector_store %arg7[%c0_10, %c0_11], %14 {strides = array<i32>} : memref<8x8xf32, #tpu.memory_space<vmem>>, vector<8x8xf32>,
    %c0_12 = arith.constant 0 : index
    %c0_13 = arith.constant 0 : index
    %16 = vector.load %arg7[%c0_12, %c0_13] : memref<8x8xf32, #tpu.memory_space<vmem>>, vector<8x8xf32>
    %cst_14 = arith.constant dense<0.000000e+00> : vector<4x8xf32>
    %17 = tpu.matmul %1, %16, %cst_14 {dimension_numbers = #tpu.dot_dimension_numbers<[1], [0], [0], [1], [0, 0, 1, 1], [], []>} : vector<4x8xf32>, vector<8x8xf32>, vector<4x8xf32> -> vector<4x8xf32>
    %c0_15 = arith.constant 0 : index
    %c0_16 = arith.constant 0 : index
    %c0_17 = arith.constant 0 : index
    %18 = vector.load %arg6[%c0_15, %c0_16, %c0_17] : memref<1x4x8xf32, #tpu.memory_space<vmem>>, vector<1x4x8xf32>
    %19 = vector.shape_cast %18 : vector<1x4x8xf32> to vector<4x8xf32>
    %20 = vector.shape_cast %17 : vector<4x8xf32> to vector<1x4x8xf32>
    tpu.vector_store %arg6[%c0_15, %c0_16, %c0_17], %20 {strides = array<i32>} : memref<1x4x8xf32, #tpu.memory_space<vmem>>, vector<1x4x8xf32>,
    return
  }
  func.func @transform_0(%arg0: i32, %arg1: i32) -> (i32, i32) {
    %c0_i32 = arith.constant 0 : i32
    %c0_i32_0 = arith.constant 0 : i32
    %c0_i32_1 = arith.constant 0 : i32
    return %c0_i32, %c0_i32_0 : i32, i32
  }
  func.func @transform_1(%arg0: i32, %arg1: i32) -> (i32, i32) {
    %c0_i32 = arith.constant 0 : i32
    %c0_i32_0 = arith.constant 0 : i32
    %c0_i32_1 = arith.constant 0 : i32
    return %c0_i32, %c0_i32_0 : i32, i32
  }
  func.func @transform_2(%arg0: i32, %arg1: i32) -> (i32, i32) {
    %c0_i32 = arith.constant 0 : i32
    %c0_i32_0 = arith.constant 0 : i32
    %c0_i32_1 = arith.constant 0 : i32
    return %c0_i32, %c0_i32_0 : i32, i32
  }
  func.func @transform_3(%arg0: i32, %arg1: i32) -> (i32, i32, i32) {
    %c0_i32 = arith.constant 0 : i32
    %c0_i32_0 = arith.constant 0 : i32
    return %arg0, %c0_i32, %arg1 : i32, i32, i32
  }
  func.func @transform_4(%arg0: i32, %arg1: i32) -> (i32, i32, i32) {
    %c0_i32 = arith.constant 0 : i32
    %c0_i32_0 = arith.constant 0 : i32
    return %arg0, %c0_i32, %arg1 : i32, i32, i32
  }
}

</mosaic_0001>

<llo_original>
// kernel: tpu_custom_call.1
$region0: #{tpu_custom_call.1}
  #allocation0 [shape = 'u32[]', space=smem, size = 0x4, offset = 0x4, fixed_abs, tag = 'smem constant byte address 0x4 - core index']
  #allocation1 [shape = 'u32[144,128]{1,0:T(1,128)}', space=vmem, size = 0x12000, scoped, tag = 'internal scratch']
  #allocation2 [shape = 'f32[8,8]{1,0:T(8,128)}', space=vmem, size = 0x1000, scoped, tag = 'scratch operand']
  %s0 = inlined_call_operand.vmem [shape: f32[8,2], index: 0, kind: input, shape index: {}]
  %s1 = inlined_call_operand.vmem [shape: f32[4,8], index: 1, kind: input, shape index: {}]
  %s2 = inlined_call_operand.vmem [shape: f32[16,8], index: 2, kind: input, shape index: {}]
  %s3 = inlined_call_operand.vmem [shape: f32[2,8,16], index: 3, kind: input, shape index: {}]
  %s4 = inlined_call_operand.hbm [shape: f32[2,4,8], index: 4, kind: output, shape index: {}]
  %s5 = sld [smem:[#allocation0]]
  $region49: #{tpu_custom_call.1} parent=0
    _
  %s7 = ssub.s32 1, %s5
  %s8 = scalar_select 0, %s7, %s5
  $region1: #{tpu_custom_call.1} parent=0
    #allocation3 [shape = 'u8[4096]{0}', space=vmem, size = 0x1000, scoped, tag = 'output window, operand 0']
    #allocation4 [shape = 's32[2]{0}', space=sflag, size = 0x8, scoped, tag = 'scoped memory for tpu_custom_call.1']
    %9 = vsyncpa [#allocation4], 0
    %s10 = scalar_lea.sflag [#allocation4], 1
    %11 = vsyncpa %s10, 0
    loop: start=0, step=1, limit=4
    $region2: #{tpu_custom_call.1} parent=1 // loop_pre_header
      _
    $region3: #{tpu_custom_call.1} parent=1 // loop_header
      %s13 = sphi 0, %s17
      %p14 = scmp.ge.s32.totalorder %s13, 4
      %s20 = sphi 0, %s32
      %s21 = sphi 0, %s28
      %s22 = sphi 0, %s20
      %s23 = sphi 0, %s21
      %s24 = sphi 0, %s22
      %s25 = sphi 0, %s23
      %s33 = sphi 0, %s33
      %s35 = sphi 0, %s33
      %s36 = sphi 0, %s35
      %s50 = sphi 0, %s36
      %s54 = sphi 0, %s54
      %s56 = sphi 0, %s54
      %s57 = sphi 0, %s56
      %s71 = sphi 0, %s57
      %s75 = sphi 0, %s75
      %s77 = sphi 0, %s75
      %s78 = sphi 0, %s77
      %s92 = sphi 0, %s78
      %s100 = sphi 0, %s102
      %s103 = sphi 0, %s100
      %s104 = sphi 0, %s103
      %s120 = sphi 0, %s104
      %s128 = sphi 0, %s130
      %s131 = sphi 0, %s128
      %s132 = sphi 0, %s131
      %s148 = sphi 0, %s132
    $region4: #{tpu_custom_call.1} parent=1 // loop_header_branch
      %16 = sbr.rel (%p14) target = $region8
    $region5: #{tpu_custom_call.1} parent=1 // loop_body
      %s18 = ssub.s32 %s13, 1
      %s19 = ssub.s32 %s13, 2
      %s26 = sadd.s32 1, %s21
      %p27 = scmp.ge.s32.totalorder %s26, 1
      %s28 = scalar_select %p27, 0, %s26
      %s29 = sadd.s32 1, %s20
      %s30 = scalar_select %p27, %s29, %s20
      %p31 = scmp.ge.s32.totalorder %s30, 2
      %s32 = scalar_select %p31, 0, %s30
      %s34 = sadd.s32 %s33, 1
      %p37 = scmp.eq.s32.totalorder %s13, 1
      %p38 = scmp.ne.s32.totalorder %s33, %s35
      %p39 = scmp.eq.s32.totalorder %s13, 0
      %p40 = por %p38, %p39
      %p41 = scmp.ne.s32.totalorder %s33, %s35
      %p42 = scmp.eq.s32.totalorder %s18, 1
      %p43 = por %p41, %p42
      %p44 = scmp.ne.s32.totalorder %s35, %s36
      %p45 = scmp.eq.s32.totalorder %s18, 0
      %p46 = por %p44, %p45
      %p47 = scmp.ne.s32.totalorder %s35, %s36
      %p48 = scmp.eq.s32.totalorder %s19, 1
      %p49 = por %p47, %p48
      %p51 = scmp.ne.s32.totalorder %s36, %s50
      %p52 = scmp.eq.s32.totalorder %s19, 0
      %p53 = por %p51, %p52
      %s55 = sadd.s32 %s54, 1
      %p58 = scmp.eq.s32.totalorder %s13, 1
      %p59 = scmp.ne.s32.totalorder %s54, %s56
      %p60 = scmp.eq.s32.totalorder %s13, 0
      %p61 = por %p59, %p60
      %p62 = scmp.ne.s32.totalorder %s54, %s56
      %p63 = scmp.eq.s32.totalorder %s18, 1
      %p64 = por %p62, %p63
      %p65 = scmp.ne.s32.totalorder %s56, %s57
      %p66 = scmp.eq.s32.totalorder %s18, 0
      %p67 = por %p65, %p66
      %p68 = scmp.ne.s32.totalorder %s56, %s57
      %p69 = scmp.eq.s32.totalorder %s19, 1
      %p70 = por %p68, %p69
      %p72 = scmp.ne.s32.totalorder %s57, %s71
      %p73 = scmp.eq.s32.totalorder %s19, 0
      %p74 = por %p72, %p73
      %s76 = sadd.s32 %s75, 1
      %p79 = scmp.eq.s32.totalorder %s13, 1
      %p80 = scmp.ne.s32.totalorder %s75, %s77
      %p81 = scmp.eq.s32.totalorder %s13, 0
      %p82 = por %p80, %p81
      %p83 = scmp.ne.s32.totalorder %s75, %s77
      %p84 = scmp.eq.s32.totalorder %s18, 1
      %p85 = por %p83, %p84
      %p86 = scmp.ne.s32.totalorder %s77, %s78
      %p87 = scmp.eq.s32.totalorder %s18, 0
      %p88 = por %p86, %p87
      %p89 = scmp.ne.s32.totalorder %s77, %s78
      %p90 = scmp.eq.s32.totalorder %s19, 1
      %p91 = por %p89, %p90
      %p93 = scmp.ne.s32.totalorder %s78, %s92
      %p94 = scmp.eq.s32.totalorder %s19, 0
      %p95 = por %p93, %p94
      %s96 = ssub.s32 %s20, %s32
      %s97 = ssub.s32 %s21, %s28
      %s98 = sor.u32 %s96, %s97
      %p99 = scmp.eq.s32.totalorder %s98, 0
      %s101 = sadd.s32 %s100, 1
      %s102 = scalar_select %p99, %s100, %s101
      %p105 = pneg %p99
      %p106 = scmp.eq.s32.totalorder %s13, 1
      %p107 = por %p105, %p106
      %p108 = scmp.ne.s32.totalorder %s100, %s103
      %p109 = scmp.eq.s32.totalorder %s13, 0
      %p110 = por %p108, %p109
      %p111 = scmp.ne.s32.totalorder %s100, %s103
      %p112 = scmp.eq.s32.totalorder %s18, 1
      %p113 = por %p111, %p112
      %p114 = scmp.ne.s32.totalorder %s103, %s104
      %p115 = scmp.eq.s32.totalorder %s18, 0
      %p116 = por %p114, %p115
      %p117 = scmp.ne.s32.totalorder %s103, %s104
      %p118 = scmp.eq.s32.totalorder %s19, 1
      %p119 = por %p117, %p118
      %p121 = scmp.ne.s32.totalorder %s104, %s120
      %p122 = scmp.eq.s32.totalorder %s19, 0
      %p123 = por %p121, %p122
      %s124 = ssub.s32 %s20, %s32
      %s125 = ssub.s32 %s21, %s28
      %s126 = sor.u32 %s124, %s125
      %p127 = scmp.eq.s32.totalorder %s126, 0
      %s129 = sadd.s32 %s128, 1
      %s130 = scalar_select %p127, %s128, %s129
      %p133 = pneg %p127
      %p134 = scmp.eq.s32.totalorder %s13, 1
      %p135 = por %p133, %p134
      %p136 = scmp.ne.s32.totalorder %s128, %s131
      %p137 = scmp.eq.s32.totalorder %s13, 0
      %p138 = por %p136, %p137
      %p139 = scmp.ne.s32.totalorder %s128, %s131
      %p140 = scmp.eq.s32.totalorder %s18, 1
      %p141 = por %p139, %p140
      %p142 = scmp.ne.s32.totalorder %s131, %s132
      %p143 = scmp.eq.s32.totalorder %s18, 0
      %p144 = por %p142, %p143
      %p145 = scmp.ne.s32.totalorder %s131, %s132
      %p146 = scmp.eq.s32.totalorder %s19, 1
      %p147 = por %p145, %p146
      %p149 = scmp.ne.s32.totalorder %s132, %s148
      %p150 = scmp.eq.s32.totalorder %s19, 0
      %p151 = por %p149, %p150
      %p152 = scmp.le.s32.totalorder 1, %s13
      %p153 = scmp.lt.s32.totalorder %s13, 3
      %p154 = pnand %p152, %p153
      %p155 = pneg %p154
      // Predicated region
      $region9: #{tpu_custom_call.1} parent=5 // pred_check
        _
      $region10: #{tpu_custom_call.1} parent=5 // pred_check_branch
        %157 = sbr.rel (%p154) target = $region12
      $region11: #{tpu_custom_call.1} parent=5 // pred_region
        %s158 = ssub.s32 %s13, 1
        // Predicated region
        $region13: #{tpu_custom_call.1} parent=11 // pred_check
          %p159 = pneg %p46
        $region14: #{tpu_custom_call.1} parent=11 // pred_check_branch
          %161 = sbr.rel (%p159) target = $region16
        $region15: #{tpu_custom_call.1} parent=11 // pred_region
          _
        $region16: #{tpu_custom_call.1} parent=11 // pred_fallthru
          _
        // Predicated region
        $region17: #{tpu_custom_call.1} parent=11 // pred_check
          %p162 = pneg %p67
        $region18: #{tpu_custom_call.1} parent=11 // pred_check_branch
          %164 = sbr.rel (%p162) target = $region20
        $region19: #{tpu_custom_call.1} parent=11 // pred_region
          _
        $region20: #{tpu_custom_call.1} parent=11 // pred_fallthru
          _
        // Predicated region
        $region21: #{tpu_custom_call.1} parent=11 // pred_check
          %p165 = pneg %p88
        $region22: #{tpu_custom_call.1} parent=11 // pred_check_branch
          %167 = sbr.rel (%p165) target = $region24
        $region23: #{tpu_custom_call.1} parent=11 // pred_region
          _
        $region24: #{tpu_custom_call.1} parent=11 // pred_fallthru
          _
      $region12: #{tpu_custom_call.1} parent=5 // pred_fallthru
        _
      %p168 = scmp.lt.s32.totalorder %s13, 2
      // Predicated region
      $region25: #{tpu_custom_call.1} parent=5 // pred_check
        %p169 = pneg %p168
      $region26: #{tpu_custom_call.1} parent=5 // pred_check_branch
        %171 = sbr.rel (%p169) target = $region28
      $region27: #{tpu_custom_call.1} parent=5 // pred_region
        // Predicated region
        $region29: #{tpu_custom_call.1} parent=27 // pred_check
          %p172 = pneg %p110
        $region30: #{tpu_custom_call.1} parent=27 // pred_check_branch
          %174 = sbr.rel (%p172) target = $region32
        $region31: #{tpu_custom_call.1} parent=27 // pred_region
          %p175 = scmp.lt.s32.totalorder %s20, 1
          %s176 = scalar_select %p175, %s20, 1
          %p177 = scmp.lt.s32.totalorder %s21, 0
          %s178 = scalar_select %p177, %s21, 0
          %s179 = sadd.s32 %s178, %s176
          %s180 = smul.addr %s179, 8
          %s181 = scalar_lea.vmem %s3, %s180
        $region32: #{tpu_custom_call.1} parent=27 // pred_fallthru
          _
      $region28: #{tpu_custom_call.1} parent=5 // pred_fallthru
        _
      %p182 = scmp.le.s32.totalorder 1, %s13
      %p183 = scmp.lt.s32.totalorder %s13, 3
      %p184 = pnand %p182, %p183
      %p185 = pneg %p184
      // Predicated region
      $region33: #{tpu_custom_call.1} parent=5 // pred_check
        _
      $region34: #{tpu_custom_call.1} parent=5 // pred_check_branch
        %187 = sbr.rel (%p184) target = $region36
      $region35: #{tpu_custom_call.1} parent=5 // pred_region
        %s188 = ssub.s32 %s13, 1
        %p189 = pneg %p46
        %p190 = pneg %p43
        %p191 = pneg %p67
        %p192 = pneg %p64
        %p193 = pneg %p88
        %p194 = pneg %p85
        %p195 = scmp.lt.s32.totalorder %s22, 1
        %s196 = scalar_select %p195, %s22, 1
        %p197 = scmp.lt.s32.totalorder %s23, 0
        %s198 = scalar_select %p197, %s23, 0
        %s199 = sadd.s32 %s198, %s196
        %s200 = smul.addr %s199, 8
        %s201 = scalar_lea.vmem %s3, %s200
        %p202 = pneg %p116
        %p203 = pneg %p113
        %p204 = pneg %p144
        %p205 = pneg %p141
        %s206 = sand.u32 %s131, 1
        %s207 = scalar_lea.sflag [#allocation4], %s206
        %s208 = sand.u32 %s131, 1
        %s209 = smul.addr %s208, 4
        %s210 = scalar_lea.vmem [#allocation3], %s209
        %p211 = scmp.lt.s32.totalorder %s22, 1
        %s212 = scalar_select %p211, %s22, 1
        %p213 = scmp.lt.s32.totalorder %s23, 0
        %s214 = scalar_select %p213, %s23, 0
        %s215 = sadd.s32 %s214, %s212
        %s216 = smul.addr %s215, 8
        %s217 = scalar_lea.vmem %s3, %s216
        %v218 = vld [vmem:[%s2] sm:$0xff]
        %v219 = vld [vmem:[%s2 + $0x8] sm:$0xff]
        %v220 = vld [vmem:[%s1] sm:$0xf]
        %v221 = vld [vmem:[%s0] sm:$0xff]
        %223 = vset.pattern.permute.xlu0 0
        %224 = vperm.xlu0 %223, %v221
        %v225 = vpop.permute.xlu0 %224
        %227 = vset.pattern.permute.xlu0 1
        %228 = vperm.xlu0 %227, %v221
        %v229 = vpop.permute.xlu0 %228
        %v231 = vld [vmem:[%s217] sm:$0xff]
        %v232 = vmul.f32 %v231, %v225
        %v233 = vadd.f32 %v232, %v229
        %v234 = vmax.f32 %v233, 0.0
        %vm235 = vcmask 130048
        %v237 = vsel %vm235, %v234, 0
        %239 = vmatprep.subr.mxu0 0.0
        %240 = vmatpush1.msra.mxu0 %v218
        %241 = vmatprep.subr.mxu0 0.0
        %242 = vmatpush1.msra.mxu0 %v219
        %243 = vmatprep.subr.mxu0 0.0
        %244 = vmatpush1.msra.mxu0 0.0
        %245 = vmatprep.subr.mxu0 0.0
        %246 = vmatpush1.msra.mxu0 0.0
        %247 = vmatprep.subr.mxu0 0.0
        %248 = vmatpush1.msra.mxu0 0.0
        %249 = vmatprep.subr.mxu0 0.0
        %250 = vmatpush1.msra.mxu0 0.0
        %251 = vmatprep.subr.mxu0 0.0
        %252 = vmatpush1.msra.mxu0 0.0
        %253 = vmatprep.subr.mxu0 0.0
        %254 = vmatpush1.msra.mxu0 0.0
        %255 = vmatprep.subr.mxu0 0.0
        %256 = vmatpush1.msra.mxu0 0.0
        %257 = vmatprep.subr.mxu0 0.0
        %258 = vmatpush1.msra.mxu0 0.0
        %259 = vmatprep.subr.mxu0 0.0
        %260 = vmatpush1.msra.mxu0 0.0
        %261 = vmatprep.subr.mxu0 0.0
        %262 = vmatpush1.msra.mxu0 0.0
        %263 = vmatprep.subr.mxu0 0.0
        %264 = vmatpush1.msra.mxu0 0.0
        %265 = vmatprep.subr.mxu0 0.0
        %266 = vmatpush1.msra.mxu0 0.0
        %267 = vmatprep.subr.mxu0 0.0
        %268 = vmatpush1.msra.mxu0 0.0
        %269 = vmatprep.subr.mxu0 0.0
        %270 = vmatpush1.msra.mxu0 0.0
        %271 = vmatprep.subr.mxu0 0.0
        %272 = vmatpush1.msra.mxu0 0.0
        %273 = vmatprep.subr.mxu0 0.0
        %274 = vmatpush1.msra.mxu0 0.0
        %275 = vmatprep.subr.mxu0 0.0
        %276 = vmatpush1.msra.mxu0 0.0
        %277 = vmatprep.subr.mxu0 0.0
        %278 = vmatpush1.msra.mxu0 0.0
        %279 = vmatprep.subr.mxu0 0.0
        %280 = vmatpush1.msra.mxu0 0.0
        %281 = vmatprep.subr.mxu0 0.0
        %282 = vmatpush1.msra.mxu0 0.0
        %283 = vmatprep.subr.mxu0 0.0
        %284 = vmatpush1.msra.mxu0 0.0
        %285 = vmatprep.subr.mxu0 0.0
        %286 = vmatpush1.msra.mxu0 0.0
        %287 = vmatprep.subr.mxu0 0.0
        %288 = vmatpush1.msra.mxu0 0.0
        %289 = vmatprep.subr.mxu0 0.0
        %290 = vmatpush1.msra.mxu0 0.0
        %291 = vmatprep.subr.mxu0 0.0
        %292 = vmatpush1.msra.mxu0 0.0
        %293 = vmatprep.subr.mxu0 0.0
        %294 = vmatpush1.msra.mxu0 0.0
        %295 = vmatprep.subr.mxu0 0.0
        %296 = vmatpush1.msra.mxu0 0.0
        %297 = vmatprep.subr.mxu0 0.0
        %298 = vmatpush1.msra.mxu0 0.0
        %299 = vmatprep.subr.mxu0 0.0
        %300 = vmatpush1.msra.mxu0 0.0
        %301 = vmatprep.subr.mxu0 0.0
        %302 = vmatpush1.msra.mxu0 0.0
        %303 = vmatprep.mubr.f32.mxu0 0.0
        %304 = vmatmul.mubr.f32.gmra.mrb[0].mxu0 %v237
        %v305 = vpop.f32.mrb[0].mxu0
        %v306 = vadd.f32 0.0, %v305
        %v307 = vpop.f32.mrb[0].mxu0
        %308 = vdwg.mxu0
        %vm309 = vcmask 64512
        %310 = vst.msk [vmem:[#allocation2] sm:$0xff] %vm309, %v306
        %v311 = vld [vmem:[#allocation2] sm:$0xff]
        %v313 = vsel %vm309, %v220, 0
        %315 = vmatprep.subr.mxu0 0.0
        %316 = vmatpush1.msra.mxu0 %v311
        %317 = vmatprep.subr.mxu0 0.0
        %318 = vmatpush1.msra.mxu0 0.0
        %319 = vmatprep.subr.mxu0 0.0
        %320 = vmatpush1.msra.mxu0 0.0
        %321 = vmatprep.subr.mxu0 0.0
        %322 = vmatpush1.msra.mxu0 0.0
        %323 = vmatprep.subr.mxu0 0.0
        %324 = vmatpush1.msra.mxu0 0.0
        %325 = vmatprep.subr.mxu0 0.0
        %326 = vmatpush1.msra.mxu0 0.0
        %327 = vmatprep.subr.mxu0 0.0
        %328 = vmatpush1.msra.mxu0 0.0
        %329 = vmatprep.subr.mxu0 0.0
        %330 = vmatpush1.msra.mxu0 0.0
        %331 = vmatprep.subr.mxu0 0.0
        %332 = vmatpush1.msra.mxu0 0.0
        %333 = vmatprep.subr.mxu0 0.0
        %334 = vmatpush1.msra.mxu0 0.0
        %335 = vmatprep.subr.mxu0 0.0
        %336 = vmatpush1.msra.mxu0 0.0
        %337 = vmatprep.subr.mxu0 0.0
        %338 = vmatpush1.msra.mxu0 0.0
        %339 = vmatprep.subr.mxu0 0.0
        %340 = vmatpush1.msra.mxu0 0.0
        %341 = vmatprep.subr.mxu0 0.0
        %342 = vmatpush1.msra.mxu0 0.0
        %343 = vmatprep.subr.mxu0 0.0
        %344 = vmatpush1.msra.mxu0 0.0
        %345 = vmatprep.subr.mxu0 0.0
        %346 = vmatpush1.msra.mxu0 0.0
        %347 = vmatprep.subr.mxu0 0.0
        %348 = vmatpush1.msra.mxu0 0.0
        %349 = vmatprep.subr.mxu0 0.0
        %350 = vmatpush1.msra.mxu0 0.0
        %351 = vmatprep.subr.mxu0 0.0
        %352 = vmatpush1.msra.mxu0 0.0
        %353 = vmatprep.subr.mxu0 0.0
        %354 = vmatpush1.msra.mxu0 0.0
        %355 = vmatprep.subr.mxu0 0.0
        %356 = vmatpush1.msra.mxu0 0.0
        %357 = vmatprep.subr.mxu0 0.0
        %358 = vmatpush1.msra.mxu0 0.0
        %359 = vmatprep.subr.mxu0 0.0
        %360 = vmatpush1.msra.mxu0 0.0
        %361 = vmatprep.subr.mxu0 0.0
        %362 = vmatpush1.msra.mxu0 0.0
        %363 = vmatprep.subr.mxu0 0.0
        %364 = vmatpush1.msra.mxu0 0.0
        %365 = vmatprep.subr.mxu0 0.0
        %366 = vmatpush1.msra.mxu0 0.0
        %367 = vmatprep.subr.mxu0 0.0
        %368 = vmatpush1.msra.mxu0 0.0
        %369 = vmatprep.subr.mxu0 0.0
        %370 = vmatpush1.msra.mxu0 0.0
        %371 = vmatprep.subr.mxu0 0.0
        %372 = vmatpush1.msra.mxu0 0.0
        %373 = vmatprep.subr.mxu0 0.0
        %374 = vmatpush1.msra.mxu0 0.0
        %375 = vmatprep.subr.mxu0 0.0
        %376 = vmatpush1.msra.mxu0 0.0
        %377 = vmatprep.subr.mxu0 0.0
        %378 = vmatpush1.msra.mxu0 0.0
        %379 = vmatprep.mubr.f32.mxu0 0.0
        %380 = vmatmul.mubr.f32.gmra.mrb[0].mxu0 %v313
        %v381 = vpop.f32.mrb[0].mxu0
        %v382 = vadd.f32 0.0, %v381
        %v383 = vpop.f32.mrb[0].mxu0
        %384 = vdwg.mxu0
        %vm385 = vcmask 60416
        %386 = vst.msk [vmem:[%s210] sm:$0xf] %vm385, %v382
        %s387 = sand.u32 %s131, 1
        %s388 = scalar_lea.sflag [#allocation4], %s387
        %s389 = sand.u32 %s131, 1
        %s390 = smul.addr %s389, 4
        %s391 = scalar_lea.vmem [#allocation3], %s390
        // Predicated region
        $region37: #{tpu_custom_call.1} parent=35 // pred_check
          %p392 = pneg %p141
        $region38: #{tpu_custom_call.1} parent=35 // pred_check_branch
          %394 = sbr.rel (%p392) target = $region40
        $region39: #{tpu_custom_call.1} parent=35 // pred_region
          %s396 = ssub.s32 64, 64
          %397 = vsyncadd %s388, %s396
          %s398 = sadd.s32 %s23, %s22
          %s399 = smul.addr %s398, 64
          %s400 = scalar_lea.hbm %s4, %s399
          %s402 = sshll.u32 %s391, 4
          %s403 = int_to_ptr.vmem [resolvable:$true] %s402
          %405 = dma.vmem_to_hbm [thread:$0]  %s403, 64, %s400, %s388
        $region40: #{tpu_custom_call.1} parent=35 // pred_fallthru
          _
      $region36: #{tpu_custom_call.1} parent=5 // pred_fallthru
        _
      %p406 = scmp.le.s32.totalorder 2, %s13
      // Predicated region
      $region41: #{tpu_custom_call.1} parent=5 // pred_check
        %p407 = pneg %p406
      $region42: #{tpu_custom_call.1} parent=5 // pred_check_branch
        %409 = sbr.rel (%p407) target = $region44
      $region43: #{tpu_custom_call.1} parent=5 // pred_region
        %s410 = ssub.s32 %s13, 2
        // Predicated region
        $region45: #{tpu_custom_call.1} parent=43 // pred_check
          %p411 = pneg %p147
        $region46: #{tpu_custom_call.1} parent=43 // pred_check_branch
          %413 = sbr.rel (%p411) target = $region48
        $region47: #{tpu_custom_call.1} parent=43 // pred_region
          %s414 = sand.u32 %s132, 1
          %s415 = scalar_lea.sflag [#allocation4], %s414
          %s416 = sand.u32 %s132, 1
          %s417 = smul.addr %s416, 4
          %s418 = scalar_lea.vmem [#allocation3], %s417
          %419 = dma.done %s415, 64
        $region48: #{tpu_custom_call.1} parent=43 // pred_fallthru
          _
      $region44: #{tpu_custom_call.1} parent=5 // pred_fallthru
        _
    $region6: #{tpu_custom_call.1} parent=1 // loop_footer
      %s17 = sadd.s32 1, %s13
    $region7: #{tpu_custom_call.1} parent=1 // loop_footer_branch
      %12 = sbr.rel target = $region3
    $region8: #{tpu_custom_call.1} parent=1 // loop_exit
      _
    %420 = vsyncpa [#allocation4], 1
    %s421 = scalar_lea.sflag [#allocation4], 1
    %422 = vsyncpa %s421, 1

</llo_original>
